<compile_context>
chip_gen: v5e
topology: v5e:2x2
jax: 0.10.0
libtpu: 0.0.40
codegen_flags: <defaults>
</compile_context>

<pallas_src>
import functools

import jax
import jax.numpy as jnp
from jax.experimental import pallas as pl
from jax.experimental.pallas import tpu as pltpu


# ------------------------------ in-kernel helpers -----------------------------
def _layer_norm(z, w, b, eps):
    """Single-pass LayerNorm over the lane axis (f32)."""
    D = z.shape[-1]
    s1 = jnp.sum(z, axis=-1, keepdims=True)
    s2 = jnp.sum(z * z, axis=-1, keepdims=True)
    mu = s1 * (1.0 / D)
    var = s2 * (1.0 / D) - mu * mu
    return (z - mu) * jax.lax.rsqrt(var + eps) * w + b


def _multihead_attention(q, k, v, num_heads):
    """q: (TQ, D) bf16 (pre-scaled by 1/sqrt(dh)); k, v: (S, D) bf16."""
    D = q.shape[-1]
    dh = D // num_heads
    # contract the dh dims directly -> MXU consumes K un-transposed (no XLU pass)
    dn = (((1,), (1,)), ((), ()))
    head_outs = []
    for h in range(num_heads):                     # static unroll over heads
        lo = h * dh
        qh = q[:, lo:lo + dh]
        kh = k[:, lo:lo + dh]
        vh = v[:, lo:lo + dh]
        s = jax.lax.dot_general(qh, kh, dn,
                                preferred_element_type=jnp.float32)   # (TQ, S)
        m = jnp.max(s, axis=-1, keepdims=True)
        p = jnp.exp(s - m)
        l = jnp.sum(p, axis=-1, keepdims=True)
        oh = jnp.dot(p.astype(jnp.bfloat16), vh,
                     preferred_element_type=jnp.float32)               # (TQ, dh)
        # normalize the small (TQ, dh) head output, not the (TQ, S) probs;
        # the reciprocal runs on the EUP slot.
        head_outs.append(oh * pl.reciprocal(l, approx=True))
    return jnp.concatenate(head_outs, axis=-1)     # single lane-dense (TQ, D)


def _mlp(ln2, w1, b1, w2, b2):
    h1 = jnp.dot(ln2.astype(jnp.bfloat16), w1,
                 preferred_element_type=jnp.float32) + b1
    h1 = jnp.maximum(h1, 0.0)
    return jnp.dot(h1.astype(jnp.bfloat16), w2,
                   preferred_element_type=jnp.float32) + b2


# ------------------- single-call fused kernel (S fits one tile) ---------------
def fused_block_kernel(x_ref, ln1w_ref, ln1b_ref, wqkv_ref, bqkv_ref,
                       ln2w_ref, ln2b_ref, w1_ref, b1_ref, w2_ref, b2_ref,
                       out_ref, *, num_heads, eps):
    x = x_ref[...]                                 # (S, D) f32
    D = x.shape[-1]
    dh = D // num_heads
    scale = 1.0 / (dh ** 0.5)                      # torch: /(embed_dim/num_heads)**0.5

    ln1 = _layer_norm(x, ln1w_ref[...], ln1b_ref[...], eps)
    qkv = jnp.dot(ln1.astype(jnp.bfloat16), wqkv_ref[...],
                  preferred_element_type=jnp.float32) + bqkv_ref[...]   # (S, 3D)
    q = (qkv[:, :D] * scale).astype(jnp.bfloat16)  # fold 1/sqrt(dh) into Q once
    k = qkv[:, D:2 * D].astype(jnp.bfloat16)
    v = qkv[:, 2 * D:].astype(jnp.bfloat16)

    attn = _multihead_attention(q, k, v, num_heads)
    res = x + attn                                 # f32 residual

    ln2 = _layer_norm(res, ln2w_ref[...], ln2b_ref[...], eps)
    mlp = _mlp(ln2, w1_ref[...], b1_ref[...], w2_ref[...], b2_ref[...])
    out_ref[...] = mlp + res                       # == mlp + x + attn


# --------------------------- phase 1: LN1 + fused QKV -------------------------
def ln1_qkv_kernel(x_ref, ln1w_ref, ln1b_ref, wqkv_ref, bqkv_ref,
                   q_ref, k_ref, v_ref, *, num_heads, eps):
    x = x_ref[...]                                 # (TS, D) f32
    D = x.shape[-1]
    dh = D // num_heads
    scale = 1.0 / (dh ** 0.5)

    ln1 = _layer_norm(x, ln1w_ref[...], ln1b_ref[...], eps)
    qkv = jnp.dot(ln1.astype(jnp.bfloat16), wqkv_ref[...],
                  preferred_element_type=jnp.float32) + bqkv_ref[...]   # (TS, 3D)

    q_ref[...] = (qkv[:, :D] * scale).astype(jnp.bfloat16)
    k_ref[...] = qkv[:, D:2 * D].astype(jnp.bfloat16)
    v_ref[...] = qkv[:, 2 * D:].astype(jnp.bfloat16)


# ------------------------ phase 2: attention + LN2 + MLP ----------------------
def attn_mlp_kernel(x_ref, q_ref, k_ref, v_ref,
                    ln2w_ref, ln2b_ref, w1_ref, b1_ref, w2_ref, b2_ref,
                    out_ref, *, num_heads, eps):
    x = x_ref[...]                                 # (TS, D) f32  residual input
    q = q_ref[...]                                 # (TS, D) bf16 (pre-scaled)
    k = k_ref[...]                                 # (S,  D) bf16 full sequence
    v = v_ref[...]                                 # (S,  D) bf16 full sequence

    attn = _multihead_attention(q, k, v, num_heads)
    res = x + attn

    ln2 = _layer_norm(res, ln2w_ref[...], ln2b_ref[...], eps)
    mlp = _mlp(ln2, w1_ref[...], b1_ref[...], w2_ref[...], b2_ref[...])
    out_ref[...] = mlp + res


# --------------------------------- wrapper ------------------------------------
def block_forward(x, params, *, num_heads=8, eps=1e-6, max_row_tile=256):
    (ln1w, ln1b, wq, bq, wk, bk, wv, bv,
     ln2w, ln2b, w1, b1, w2, b2) = params
    S, D = x.shape
    D4 = 4 * D

    # Fused bf16 QKV weight/bias: one MXU matmul instead of three.
    wqkv = jnp.concatenate([wq, wk, wv], axis=1).astype(jnp.bfloat16)   # (D, 3D)
    bqkv = jnp.concatenate([bq, bk, bv], axis=1)                        # (1, 3D) f32
    w1_b = w1.astype(jnp.bfloat16)
    w2_b = w2.astype(jnp.bfloat16)

    def const(shape):
        # fetched once, stays VMEM-resident across the whole row grid
        return pl.BlockSpec(shape, lambda i: tuple(0 for _ in shape))

    def vmem_limit(nbytes):
        # valid on v5e/v6e (128 MiB) and v7x (64 MiB per TensorCore)
        return int(max(16 << 20, min(int(nbytes * 1.5) + (4 << 20), 64 << 20)))

    weight_bytes = (D * 3 * D) * 2 + (D * D4 + D4 * D) * 2 \
        + (7 * D + 2 * 3 * D + D4) * 4              # bf16 mats + f32 vectors

    # ---- fused single-call path (whole sequence fits one row tile) -----------
    if S <= max_row_tile:
        act_bytes = (4 * S * D * 4                  # x/out tiles (double-buffered)
                     + S * 3 * D * 4 + S * 3 * D * 2  # qkv f32 + q/k/v bf16
                     + S * S * 4 + S * D4 * 4       # scores, h1
                     + 6 * S * D * 4)               # attn/res/ln2/misc f32 temps
        return pl.pallas_call(
            functools.partial(fused_block_kernel, num_heads=num_heads, eps=eps),
            grid=(1,),
            in_specs=[const((S, D)),
                      const((1, D)), const((1, D)),
                      const((D, 3 * D)), const((1, 3 * D)),
                      const((1, D)), const((1, D)),
                      const((D, D4)), const((1, D4)),
                      const((D4, D)), const((1, D))],
            out_specs=const((S, D)),
            out_shape=jax.ShapeDtypeStruct((S, D), jnp.float32),
            compiler_params=pltpu.CompilerParams(
                dimension_semantics=("arbitrary",),
                vmem_limit_bytes=vmem_limit(weight_bytes + act_bytes)),
        )(x, ln1w, ln1b, wqkv, bqkv, ln2w, ln2b, w1_b, b1, w2_b, b2)

    # ---- two-phase path (long sequences) --------------------------------------
    TS = max_row_tile
    grid = (pl.cdiv(S, TS),)
    row_spec = pl.BlockSpec((TS, D), lambda i: (i, 0))

    # phase 1: LN1 + fused QKV
    vmem1 = vmem_limit(
        (D * 3 * D) * 2 + (2 * D + 3 * D) * 4       # resident bf16 weight + vectors
        + 2 * TS * D * 4                            # double-buffered x tile
        + 3 * 2 * TS * D * 2                        # double-buffered q/k/v out tiles
        + TS * 3 * D * 4 + 2 * TS * D * 4)          # in-flight f32 activations
    q, k, v = pl.pallas_call(
        functools.partial(ln1_qkv_kernel, num_heads=num_heads, eps=eps),
        grid=grid,
        in_specs=[row_spec,
                  const((1, D)), const((1, D)),
                  const((D, 3 * D)), const((1, 3 * D))],
        out_specs=[row_spec, row_spec, row_spec],
        out_shape=[jax.ShapeDtypeStruct((S, D), jnp.bfloat16)] * 3,
        compiler_params=pltpu.CompilerParams(
            dimension_semantics=("parallel",),
            vmem_limit_bytes=vmem1),
    )(x, ln1w, ln1b, wqkv, bqkv)

    # phase 2: attention + LN2 + MLP (full K/V resident)
    vmem2 = vmem_limit(
        (D * D4 + D4 * D) * 2 + (D4 + 3 * D) * 4    # resident bf16 MLP weights + vecs
        + 2 * S * D * 2                             # K, V full sequence (bf16)
        + 2 * TS * D * 4 + 2 * TS * D * 2           # double-buffered x / q tiles
        + 2 * TS * D * 4                            # double-buffered out tile
        + TS * S * 4 + TS * D4 * 4 + 4 * TS * D * 4)  # scores, h1, misc f32 temps
    out = pl.pallas_call(
        functools.partial(attn_mlp_kernel, num_heads=num_heads, eps=eps),
        grid=grid,
        in_specs=[row_spec, row_spec,
                  const((S, D)), const((S, D)),
                  const((1, D)), const((1, D)),
                  const((D, D4)), const((1, D4)),
                  const((D4, D)), const((1, D))],
        out_specs=row_spec,
        out_shape=jax.ShapeDtypeStruct((S, D), jnp.float32),
        compiler_params=pltpu.CompilerParams(
            dimension_semantics=("parallel",),
            vmem_limit_bytes=vmem2),
    )(x, q, k, v, ln2w, ln2b, w1_b, b1, w2_b, b2)
    return out


# ----------------------------- pure-JAX reference ----------------------------
def block_reference(x, params, *, num_heads=8, eps=1e-6):
    (ln1w, ln1b, wq, bq, wk, bk, wv, bv,
     ln2w, ln2b, w1, b1, w2, b2) = params
    S, D = x.shape
    dh = D // num_heads

    def ln(z, w, b):
        mu = jnp.mean(z, axis=-1, keepdims=True)
        var = jnp.mean((z - mu) ** 2, axis=-1, keepdims=True)
        return (z - mu) * jax.lax.rsqrt(var + eps) * w + b

    l1 = ln(x, ln1w, ln1b)
    q = (l1 @ wq + bq).reshape(S, num_heads, dh).transpose(1, 0, 2)   # (H, S, dh)
    k = (l1 @ wk + bk).reshape(S, num_heads, dh).transpose(1, 2, 0)   # (H, dh, S)
    v = (l1 @ wv + bv).reshape(S, num_heads, dh).transpose(1, 0, 2)   # (H, S, dh)
    qk = jax.nn.softmax(jnp.matmul(q, k) / (dh ** 0.5), axis=-1)      # (H, S, S)
    attn = jnp.matmul(qk, v).transpose(1, 0, 2).reshape(S, D)
    l2 = ln(x + attn, ln2w, ln2b)
    mlp = jnp.maximum(l2 @ w1 + b1, 0.0) @ w2 + b2
    return mlp + x + attn


def make_params(key, d_model):
    ks = jax.random.split(key, 14)
    d4 = d_model * 4
    ln1w = 1.0 + 0.01 * jax.random.normal(ks[0], (1, d_model), jnp.float32)
    ln1b = 0.01 * jax.random.normal(ks[1], (1, d_model), jnp.float32)
    wq = 0.05 * jax.random.normal(ks[2], (d_model, d_model), jnp.float32)
    bq = 0.01 * jax.random.normal(ks[3], (1, d_model), jnp.float32)
    wk = 0.05 * jax.random.normal(ks[4], (d_model, d_model), jnp.float32)
    bk = 0.01 * jax.random.normal(ks[5], (1, d_model), jnp.float32)
    wv = 0.05 * jax.random.normal(ks[6], (d_model, d_model), jnp.float32)
    bv = 0.01 * jax.random.normal(ks[7], (1, d_model), jnp.float32)
    ln2w = 1.0 + 0.01 * jax.random.normal(ks[8], (1, d_model), jnp.float32)
    ln2b = 0.01 * jax.random.normal(ks[9], (1, d_model), jnp.float32)
    w1 = 0.05 * jax.random.normal(ks[10], (d_model, d4), jnp.float32)
    b1 = 0.01 * jax.random.normal(ks[11], (1, d4), jnp.float32)
    w2 = 0.05 * jax.random.normal(ks[12], (d4, d_model), jnp.float32)
    b2 = 0.01 * jax.random.normal(ks[13], (1, d_model), jnp.float32)
    return (ln1w, ln1b, wq, bq, wk, bk, wv, bv, ln2w, ln2b, w1, b1, w2, b2)


if __name__ == "__main__":
    seq_len = 8
    d_model = 32
    num_heads = 8

    key = jax.random.PRNGKey(0)
    kx, kp = jax.random.split(key)
    x = jax.random.normal(kx, (seq_len, d_model), jnp.float32)
    params = make_params(kp, d_model)

    out = block_forward(x, params, num_heads=num_heads, eps=1e-6)
    out = jax.block_until_ready(out)

    ref = block_reference(x, params, num_heads=num_heads, eps=1e-6)
    assert out.shape == (seq_len, d_model)
    # bf16 MXU operands (f32 accumulate) -> loosened tolerance vs. the f32 reference.
    err = float(jnp.max(jnp.abs(out - ref)))
    assert jnp.allclose(out, ref, atol=5e-2, rtol=5e-2), err

    print("KERNEL_OK")
</pallas_src>

<mosaic_0001>
module attributes {stable_mosaic.version = 11 : i64} {
  func.func @fused_block_kernel(%arg0: i32, %arg1: memref<8x32xf32, #tpu.memory_space<vmem>>, %arg2: memref<1x32xf32, #tpu.memory_space<vmem>>, %arg3: memref<1x32xf32, #tpu.memory_space<vmem>>, %arg4: memref<32x96xbf16, #tpu.memory_space<vmem>>, %arg5: memref<1x96xf32, #tpu.memory_space<vmem>>, %arg6: memref<1x32xf32, #tpu.memory_space<vmem>>, %arg7: memref<1x32xf32, #tpu.memory_space<vmem>>, %arg8: memref<32x128xbf16, #tpu.memory_space<vmem>>, %arg9: memref<1x128xf32, #tpu.memory_space<vmem>>, %arg10: memref<128x32xbf16, #tpu.memory_space<vmem>>, %arg11: memref<1x32xf32, #tpu.memory_space<vmem>>, %arg12: memref<8x32xf32, #tpu.memory_space<vmem>>) attributes {dimension_semantics = [#tpu.dimension_semantics<arbitrary>], iteration_bounds = array<i64: 1>, scalar_prefetch = 0 : i64, scratch_operands = 0 : i64, tpu.core_type = #tpu.core_type<tc>, window_params = [{pipeline_mode = #tpu.pipeline_mode<synchronous>, transform_indices = @transform_0, window_bounds = array<i64: 8, 32>}, {pipeline_mode = #tpu.pipeline_mode<synchronous>, transform_indices = @transform_1, window_bounds = array<i64: 1, 32>}, {pipeline_mode = #tpu.pipeline_mode<synchronous>, transform_indices = @transform_2, window_bounds = array<i64: 1, 32>}, {pipeline_mode = #tpu.pipeline_mode<synchronous>, transform_indices = @transform_3, window_bounds = array<i64: 32, 96>}, {pipeline_mode = #tpu.pipeline_mode<synchronous>, transform_indices = @transform_4, window_bounds = array<i64: 1, 96>}, {pipeline_mode = #tpu.pipeline_mode<synchronous>, transform_indices = @transform_5, window_bounds = array<i64: 1, 32>}, {pipeline_mode = #tpu.pipeline_mode<synchronous>, transform_indices = @transform_6, window_bounds = array<i64: 1, 32>}, {pipeline_mode = #tpu.pipeline_mode<synchronous>, transform_indices = @transform_7, window_bounds = array<i64: 32, 128>}, {pipeline_mode = #tpu.pipeline_mode<synchronous>, transform_indices = @transform_8, window_bounds = array<i64: 1, 128>}, {pipeline_mode = #tpu.pipeline_mode<synchronous>, transform_indices = @transform_9, window_bounds = array<i64: 128, 32>}, {pipeline_mode = #tpu.pipeline_mode<synchronous>, transform_indices = @transform_10, window_bounds = array<i64: 1, 32>}, {pipeline_mode = #tpu.pipeline_mode<synchronous>, transform_indices = @transform_11, window_bounds = array<i64: 8, 32>}]} {
    %c0 = arith.constant 0 : index
    %c0_0 = arith.constant 0 : index
    %0 = vector.load %arg1[%c0, %c0_0] : memref<8x32xf32, #tpu.memory_space<vmem>>, vector<8x32xf32>
    %c0_1 = arith.constant 0 : index
    %c0_2 = arith.constant 0 : index
    %1 = vector.load %arg2[%c0_1, %c0_2] : memref<1x32xf32, #tpu.memory_space<vmem>>, vector<1x32xf32>
    %c0_3 = arith.constant 0 : index
    %c0_4 = arith.constant 0 : index
    %2 = vector.load %arg3[%c0_3, %c0_4] : memref<1x32xf32, #tpu.memory_space<vmem>>, vector<1x32xf32>
    %cst = arith.constant dense<0.000000e+00> : vector<8xf32>
    %3 = vector.multi_reduction <add>, %0, %cst [1] : vector<8x32xf32> to vector<8xf32>
    %4 = vector.shape_cast %3 : vector<8xf32> to vector<8x1xf32>
    %5 = arith.mulf %0, %0 : vector<8x32xf32>
    %cst_5 = arith.constant dense<0.000000e+00> : vector<8xf32>
    %6 = vector.multi_reduction <add>, %5, %cst_5 [1] : vector<8x32xf32> to vector<8xf32>
    %7 = vector.shape_cast %6 : vector<8xf32> to vector<8x1xf32>
    %cst_6 = arith.constant 3.125000e-02 : f32
    %8 = vector.broadcast %cst_6 : f32 to vector<8x1xf32>
    %9 = arith.mulf %4, %8 : vector<8x1xf32>
    %cst_7 = arith.constant 3.125000e-02 : f32
    %10 = vector.broadcast %cst_7 : f32 to vector<8x1xf32>
    %11 = arith.mulf %7, %10 : vector<8x1xf32>
    %12 = arith.mulf %9, %9 : vector<8x1xf32>
    %13 = arith.subf %11, %12 : vector<8x1xf32>
    %14 = vector.broadcast %9 : vector<8x1xf32> to vector<8x32xf32>
    %15 = arith.subf %0, %14 : vector<8x32xf32>
    %cst_8 = arith.constant 9.99999997E-7 : f32
    %16 = vector.broadcast %cst_8 : f32 to vector<8x1xf32>
    %17 = arith.addf %13, %16 : vector<8x1xf32>
    %18 = math.rsqrt %17 : vector<8x1xf32>
    %19 = vector.broadcast %18 : vector<8x1xf32> to vector<8x32xf32>
    %20 = arith.mulf %15, %19 : vector<8x32xf32>
    %21 = vector.broadcast %1 : vector<1x32xf32> to vector<8x32xf32>
    %22 = arith.mulf %20, %21 : vector<8x32xf32>
    %23 = vector.broadcast %2 : vector<1x32xf32> to vector<8x32xf32>
    %24 = arith.addf %22, %23 : vector<8x32xf32>
    %25 = arith.truncf %24 : vector<8x32xf32> to vector<8x32xbf16>
    %c0_9 = arith.constant 0 : index
    %c0_10 = arith.constant 0 : index
    %26 = vector.load %arg4[%c0_9, %c0_10] : memref<32x96xbf16, #tpu.memory_space<vmem>>, vector<32x96xbf16>
    %cst_11 = arith.constant dense<0.000000e+00> : vector<8x96xf32>
    %27 = tpu.matmul %25, %26, %cst_11 {dimension_numbers = #tpu.dot_dimension_numbers<[1], [0], [0], [1], [0, 0, 1, 1], [], []>} : vector<8x32xbf16>, vector<32x96xbf16>, vector<8x96xf32> -> vector<8x96xf32>
    %c0_12 = arith.constant 0 : index
    %c0_13 = arith.constant 0 : index
    %28 = vector.load %arg5[%c0_12, %c0_13] : memref<1x96xf32, #tpu.memory_space<vmem>>, vector<1x96xf32>
    %29 = vector.broadcast %28 : vector<1x96xf32> to vector<8x96xf32>
    %30 = arith.addf %27, %29 : vector<8x96xf32>
    %31 = vector.extract_strided_slice %30 {offsets = [0, 0], sizes = [8, 32], strides = [1, 1]} : vector<8x96xf32> to vector<8x32xf32>
    %cst_14 = arith.constant 5.000000e-01 : f32
    %32 = vector.broadcast %cst_14 : f32 to vector<8x32xf32>
    %33 = arith.mulf %31, %32 : vector<8x32xf32>
    %34 = arith.truncf %33 : vector<8x32xf32> to vector<8x32xbf16>
    %35 = vector.extract_strided_slice %30 {offsets = [0, 32], sizes = [8, 32], strides = [1, 1]} : vector<8x96xf32> to vector<8x32xf32>
    %36 = arith.truncf %35 : vector<8x32xf32> to vector<8x32xbf16>
    %37 = vector.extract_strided_slice %30 {offsets = [0, 64], sizes = [8, 32], strides = [1, 1]} : vector<8x96xf32> to vector<8x32xf32>
    %38 = arith.truncf %37 : vector<8x32xf32> to vector<8x32xbf16>
    %39 = vector.extract_strided_slice %34 {offsets = [0, 0], sizes = [8, 4], strides = [1, 1]} : vector<8x32xbf16> to vector<8x4xbf16>
    %40 = vector.extract_strided_slice %36 {offsets = [0, 0], sizes = [8, 4], strides = [1, 1]} : vector<8x32xbf16> to vector<8x4xbf16>
    %41 = vector.extract_strided_slice %38 {offsets = [0, 0], sizes = [8, 4], strides = [1, 1]} : vector<8x32xbf16> to vector<8x4xbf16>
    %cst_15 = arith.constant dense<0.000000e+00> : vector<8x8xf32>
    %42 = tpu.matmul %39, %40, %cst_15 {dimension_numbers = #tpu.dot_dimension_numbers<[1], [1], [0], [0], [0, 0, 1, 0], [], []>} : vector<8x4xbf16>, vector<8x4xbf16>, vector<8x8xf32> -> vector<8x8xf32>
    %cst_16 = arith.constant dense<0xFF800000> : vector<8xf32>
    %43 = vector.multi_reduction <maximumf>, %42, %cst_16 [1] : vector<8x8xf32> to vector<8xf32>
    %44 = vector.shape_cast %43 : vector<8xf32> to vector<8x1xf32>
    %45 = vector.broadcast %44 : vector<8x1xf32> to vector<8x8xf32>
    %46 = arith.subf %42, %45 : vector<8x8xf32>
    %47 = math.exp %46 : vector<8x8xf32>
    %cst_17 = arith.constant dense<0.000000e+00> : vector<8xf32>
    %48 = vector.multi_reduction <add>, %47, %cst_17 [1] : vector<8x8xf32> to vector<8xf32>
    %49 = vector.shape_cast %48 : vector<8xf32> to vector<8x1xf32>
    %50 = arith.truncf %47 : vector<8x8xf32> to vector<8x8xbf16>
    %cst_18 = arith.constant dense<0.000000e+00> : vector<8x4xf32>
    %51 = tpu.matmul %50, %41, %cst_18 {dimension_numbers = #tpu.dot_dimension_numbers<[1], [0], [0], [1], [0, 0, 1, 1], [], []>} : vector<8x8xbf16>, vector<8x4xbf16>, vector<8x4xf32> -> vector<8x4xf32>
    %52 = tpu.reciprocal %49 {approx = true} : vector<8x1xf32> -> vector<8x1xf32>
    %53 = vector.broadcast %52 : vector<8x1xf32> to vector<8x4xf32>
    %54 = arith.mulf %51, %53 : vector<8x4xf32>
    %55 = vector.extract_strided_slice %34 {offsets = [0, 4], sizes = [8, 4], strides = [1, 1]} : vector<8x32xbf16> to vector<8x4xbf16>
    %56 = vector.extract_strided_slice %36 {offsets = [0, 4], sizes = [8, 4], strides = [1, 1]} : vector<8x32xbf16> to vector<8x4xbf16>
    %57 = vector.extract_strided_slice %38 {offsets = [0, 4], sizes = [8, 4], strides = [1, 1]} : vector<8x32xbf16> to vector<8x4xbf16>
    %cst_19 = arith.constant dense<0.000000e+00> : vector<8x8xf32>
    %58 = tpu.matmul %55, %56, %cst_19 {dimension_numbers = #tpu.dot_dimension_numbers<[1], [1], [0], [0], [0, 0, 1, 0], [], []>} : vector<8x4xbf16>, vector<8x4xbf16>, vector<8x8xf32> -> vector<8x8xf32>
    %cst_20 = arith.constant dense<0xFF800000> : vector<8xf32>
    %59 = vector.multi_reduction <maximumf>, %58, %cst_20 [1] : vector<8x8xf32> to vector<8xf32>
    %60 = vector.shape_cast %59 : vector<8xf32> to vector<8x1xf32>
    %61 = vector.broadcast %60 : vector<8x1xf32> to vector<8x8xf32>
    %62 = arith.subf %58, %61 : vector<8x8xf32>
    %63 = math.exp %62 : vector<8x8xf32>
    %cst_21 = arith.constant dense<0.000000e+00> : vector<8xf32>
    %64 = vector.multi_reduction <add>, %63, %cst_21 [1] : vector<8x8xf32> to vector<8xf32>
    %65 = vector.shape_cast %64 : vector<8xf32> to vector<8x1xf32>
    %66 = arith.truncf %63 : vector<8x8xf32> to vector<8x8xbf16>
    %cst_22 = arith.constant dense<0.000000e+00> : vector<8x4xf32>
    %67 = tpu.matmul %66, %57, %cst_22 {dimension_numbers = #tpu.dot_dimension_numbers<[1], [0], [0], [1], [0, 0, 1, 1], [], []>} : vector<8x8xbf16>, vector<8x4xbf16>, vector<8x4xf32> -> vector<8x4xf32>
    %68 = tpu.reciprocal %65 {approx = true} : vector<8x1xf32> -> vector<8x1xf32>
    %69 = vector.broadcast %68 : vector<8x1xf32> to vector<8x4xf32>
    %70 = arith.mulf %67, %69 : vector<8x4xf32>
    %71 = vector.extract_strided_slice %34 {offsets = [0, 8], sizes = [8, 4], strides = [1, 1]} : vector<8x32xbf16> to vector<8x4xbf16>
    %72 = vector.extract_strided_slice %36 {offsets = [0, 8], sizes = [8, 4], strides = [1, 1]} : vector<8x32xbf16> to vector<8x4xbf16>
    %73 = vector.extract_strided_slice %38 {offsets = [0, 8], sizes = [8, 4], strides = [1, 1]} : vector<8x32xbf16> to vector<8x4xbf16>
    %cst_23 = arith.constant dense<0.000000e+00> : vector<8x8xf32>
    %74 = tpu.matmul %71, %72, %cst_23 {dimension_numbers = #tpu.dot_dimension_numbers<[1], [1], [0], [0], [0, 0, 1, 0], [], []>} : vector<8x4xbf16>, vector<8x4xbf16>, vector<8x8xf32> -> vector<8x8xf32>
    %cst_24 = arith.constant dense<0xFF800000> : vector<8xf32>
    %75 = vector.multi_reduction <maximumf>, %74, %cst_24 [1] : vector<8x8xf32> to vector<8xf32>
    %76 = vector.shape_cast %75 : vector<8xf32> to vector<8x1xf32>
    %77 = vector.broadcast %76 : vector<8x1xf32> to vector<8x8xf32>
    %78 = arith.subf %74, %77 : vector<8x8xf32>
    %79 = math.exp %78 : vector<8x8xf32>
    %cst_25 = arith.constant dense<0.000000e+00> : vector<8xf32>
    %80 = vector.multi_reduction <add>, %79, %cst_25 [1] : vector<8x8xf32> to vector<8xf32>
    %81 = vector.shape_cast %80 : vector<8xf32> to vector<8x1xf32>
    %82 = arith.truncf %79 : vector<8x8xf32> to vector<8x8xbf16>
    %cst_26 = arith.constant dense<0.000000e+00> : vector<8x4xf32>
    %83 = tpu.matmul %82, %73, %cst_26 {dimension_numbers = #tpu.dot_dimension_numbers<[1], [0], [0], [1], [0, 0, 1, 1], [], []>} : vector<8x8xbf16>, vector<8x4xbf16>, vector<8x4xf32> -> vector<8x4xf32>
    %84 = tpu.reciprocal %81 {approx = true} : vector<8x1xf32> -> vector<8x1xf32>
    %85 = vector.broadcast %84 : vector<8x1xf32> to vector<8x4xf32>
    %86 = arith.mulf %83, %85 : vector<8x4xf32>
    %87 = vector.extract_strided_slice %34 {offsets = [0, 12], sizes = [8, 4], strides = [1, 1]} : vector<8x32xbf16> to vector<8x4xbf16>
    %88 = vector.extract_strided_slice %36 {offsets = [0, 12], sizes = [8, 4], strides = [1, 1]} : vector<8x32xbf16> to vector<8x4xbf16>
    %89 = vector.extract_strided_slice %38 {offsets = [0, 12], sizes = [8, 4], strides = [1, 1]} : vector<8x32xbf16> to vector<8x4xbf16>
    %cst_27 = arith.constant dense<0.000000e+00> : vector<8x8xf32>
    %90 = tpu.matmul %87, %88, %cst_27 {dimension_numbers = #tpu.dot_dimension_numbers<[1], [1], [0], [0], [0, 0, 1, 0], [], []>} : vector<8x4xbf16>, vector<8x4xbf16>, vector<8x8xf32> -> vector<8x8xf32>
    %cst_28 = arith.constant dense<0xFF800000> : vector<8xf32>
    %91 = vector.multi_reduction <maximumf>, %90, %cst_28 [1] : vector<8x8xf32> to vector<8xf32>
    %92 = vector.shape_cast %91 : vector<8xf32> to vector<8x1xf32>
    %93 = vector.broadcast %92 : vector<8x1xf32> to vector<8x8xf32>
    %94 = arith.subf %90, %93 : vector<8x8xf32>
    %95 = math.exp %94 : vector<8x8xf32>
    %cst_29 = arith.constant dense<0.000000e+00> : vector<8xf32>
    %96 = vector.multi_reduction <add>, %95, %cst_29 [1] : vector<8x8xf32> to vector<8xf32>
    %97 = vector.shape_cast %96 : vector<8xf32> to vector<8x1xf32>
    %98 = arith.truncf %95 : vector<8x8xf32> to vector<8x8xbf16>
    %cst_30 = arith.constant dense<0.000000e+00> : vector<8x4xf32>
    %99 = tpu.matmul %98, %89, %cst_30 {dimension_numbers = #tpu.dot_dimension_numbers<[1], [0], [0], [1], [0, 0, 1, 1], [], []>} : vector<8x8xbf16>, vector<8x4xbf16>, vector<8x4xf32> -> vector<8x4xf32>
    %100 = tpu.reciprocal %97 {approx = true} : vector<8x1xf32> -> vector<8x1xf32>
    %101 = vector.broadcast %100 : vector<8x1xf32> to vector<8x4xf32>
    %102 = arith.mulf %99, %101 : vector<8x4xf32>
    %103 = vector.extract_strided_slice %34 {offsets = [0, 16], sizes = [8, 4], strides = [1, 1]} : vector<8x32xbf16> to vector<8x4xbf16>
    %104 = vector.extract_strided_slice %36 {offsets = [0, 16], sizes = [8, 4], strides = [1, 1]} : vector<8x32xbf16> to vector<8x4xbf16>
    %105 = vector.extract_strided_slice %38 {offsets = [0, 16], sizes = [8, 4], strides = [1, 1]} : vector<8x32xbf16> to vector<8x4xbf16>
    %cst_31 = arith.constant dense<0.000000e+00> : vector<8x8xf32>
    %106 = tpu.matmul %103, %104, %cst_31 {dimension_numbers = #tpu.dot_dimension_numbers<[1], [1], [0], [0], [0, 0, 1, 0], [], []>} : vector<8x4xbf16>, vector<8x4xbf16>, vector<8x8xf32> -> vector<8x8xf32>
    %cst_32 = arith.constant dense<0xFF800000> : vector<8xf32>
    %107 = vector.multi_reduction <maximumf>, %106, %cst_32 [1] : vector<8x8xf32> to vector<8xf32>
    %108 = vector.shape_cast %107 : vector<8xf32> to vector<8x1xf32>
    %109 = vector.broadcast %108 : vector<8x1xf32> to vector<8x8xf32>
    %110 = arith.subf %106, %109 : vector<8x8xf32>
    %111 = math.exp %110 : vector<8x8xf32>
    %cst_33 = arith.constant dense<0.000000e+00> : vector<8xf32>
    %112 = vector.multi_reduction <add>, %111, %cst_33 [1] : vector<8x8xf32> to vector<8xf32>
    %113 = vector.shape_cast %112 : vector<8xf32> to vector<8x1xf32>
    %114 = arith.truncf %111 : vector<8x8xf32> to vector<8x8xbf16>
    %cst_34 = arith.constant dense<0.000000e+00> : vector<8x4xf32>
    %115 = tpu.matmul %114, %105, %cst_34 {dimension_numbers = #tpu.dot_dimension_numbers<[1], [0], [0], [1], [0, 0, 1, 1], [], []>} : vector<8x8xbf16>, vector<8x4xbf16>, vector<8x4xf32> -> vector<8x4xf32>
    %116 = tpu.reciprocal %113 {approx = true} : vector<8x1xf32> -> vector<8x1xf32>
    %117 = vector.broadcast %116 : vector<8x1xf32> to vector<8x4xf32>
    %118 = arith.mulf %115, %117 : vector<8x4xf32>
    %119 = vector.extract_strided_slice %34 {offsets = [0, 20], sizes = [8, 4], strides = [1, 1]} : vector<8x32xbf16> to vector<8x4xbf16>
    %120 = vector.extract_strided_slice %36 {offsets = [0, 20], sizes = [8, 4], strides = [1, 1]} : vector<8x32xbf16> to vector<8x4xbf16>
    %121 = vector.extract_strided_slice %38 {offsets = [0, 20], sizes = [8, 4], strides = [1, 1]} : vector<8x32xbf16> to vector<8x4xbf16>
    %cst_35 = arith.constant dense<0.000000e+00> : vector<8x8xf32>
    %122 = tpu.matmul %119, %120, %cst_35 {dimension_numbers = #tpu.dot_dimension_numbers<[1], [1], [0], [0], [0, 0, 1, 0], [], []>} : vector<8x4xbf16>, vector<8x4xbf16>, vector<8x8xf32> -> vector<8x8xf32>
    %cst_36 = arith.constant dense<0xFF800000> : vector<8xf32>
    %123 = vector.multi_reduction <maximumf>, %122, %cst_36 [1] : vector<8x8xf32> to vector<8xf32>
    %124 = vector.shape_cast %123 : vector<8xf32> to vector<8x1xf32>
    %125 = vector.broadcast %124 : vector<8x1xf32> to vector<8x8xf32>
    %126 = arith.subf %122, %125 : vector<8x8xf32>
    %127 = math.exp %126 : vector<8x8xf32>
    %cst_37 = arith.constant dense<0.000000e+00> : vector<8xf32>
    %128 = vector.multi_reduction <add>, %127, %cst_37 [1] : vector<8x8xf32> to vector<8xf32>
    %129 = vector.shape_cast %128 : vector<8xf32> to vector<8x1xf32>
    %130 = arith.truncf %127 : vector<8x8xf32> to vector<8x8xbf16>
    %cst_38 = arith.constant dense<0.000000e+00> : vector<8x4xf32>
    %131 = tpu.matmul %130, %121, %cst_38 {dimension_numbers = #tpu.dot_dimension_numbers<[1], [0], [0], [1], [0, 0, 1, 1], [], []>} : vector<8x8xbf16>, vector<8x4xbf16>, vector<8x4xf32> -> vector<8x4xf32>
    %132 = tpu.reciprocal %129 {approx = true} : vector<8x1xf32> -> vector<8x1xf32>
    %133 = vector.broadcast %132 : vector<8x1xf32> to vector<8x4xf32>
    %134 = arith.mulf %131, %133 : vector<8x4xf32>
    %135 = vector.extract_strided_slice %34 {offsets = [0, 24], sizes = [8, 4], strides = [1, 1]} : vector<8x32xbf16> to vector<8x4xbf16>
    %136 = vector.extract_strided_slice %36 {offsets = [0, 24], sizes = [8, 4], strides = [1, 1]} : vector<8x32xbf16> to vector<8x4xbf16>
    %137 = vector.extract_strided_slice %38 {offsets = [0, 24], sizes = [8, 4], strides = [1, 1]} : vector<8x32xbf16> to vector<8x4xbf16>
    %cst_39 = arith.constant dense<0.000000e+00> : vector<8x8xf32>
    %138 = tpu.matmul %135, %136, %cst_39 {dimension_numbers = #tpu.dot_dimension_numbers<[1], [1], [0], [0], [0, 0, 1, 0], [], []>} : vector<8x4xbf16>, vector<8x4xbf16>, vector<8x8xf32> -> vector<8x8xf32>
    %cst_40 = arith.constant dense<0xFF800000> : vector<8xf32>
    %139 = vector.multi_reduction <maximumf>, %138, %cst_40 [1] : vector<8x8xf32> to vector<8xf32>
    %140 = vector.shape_cast %139 : vector<8xf32> to vector<8x1xf32>
    %141 = vector.broadcast %140 : vector<8x1xf32> to vector<8x8xf32>
    %142 = arith.subf %138, %141 : vector<8x8xf32>
    %143 = math.exp %142 : vector<8x8xf32>
    %cst_41 = arith.constant dense<0.000000e+00> : vector<8xf32>
    %144 = vector.multi_reduction <add>, %143, %cst_41 [1] : vector<8x8xf32> to vector<8xf32>
    %145 = vector.shape_cast %144 : vector<8xf32> to vector<8x1xf32>
    %146 = arith.truncf %143 : vector<8x8xf32> to vector<8x8xbf16>
    %cst_42 = arith.constant dense<0.000000e+00> : vector<8x4xf32>
    %147 = tpu.matmul %146, %137, %cst_42 {dimension_numbers = #tpu.dot_dimension_numbers<[1], [0], [0], [1], [0, 0, 1, 1], [], []>} : vector<8x8xbf16>, vector<8x4xbf16>, vector<8x4xf32> -> vector<8x4xf32>
    %148 = tpu.reciprocal %145 {approx = true} : vector<8x1xf32> -> vector<8x1xf32>
    %149 = vector.broadcast %148 : vector<8x1xf32> to vector<8x4xf32>
    %150 = arith.mulf %147, %149 : vector<8x4xf32>
    %151 = vector.extract_strided_slice %34 {offsets = [0, 28], sizes = [8, 4], strides = [1, 1]} : vector<8x32xbf16> to vector<8x4xbf16>
    %152 = vector.extract_strided_slice %36 {offsets = [0, 28], sizes = [8, 4], strides = [1, 1]} : vector<8x32xbf16> to vector<8x4xbf16>
    %153 = vector.extract_strided_slice %38 {offsets = [0, 28], sizes = [8, 4], strides = [1, 1]} : vector<8x32xbf16> to vector<8x4xbf16>
    %cst_43 = arith.constant dense<0.000000e+00> : vector<8x8xf32>
    %154 = tpu.matmul %151, %152, %cst_43 {dimension_numbers = #tpu.dot_dimension_numbers<[1], [1], [0], [0], [0, 0, 1, 0], [], []>} : vector<8x4xbf16>, vector<8x4xbf16>, vector<8x8xf32> -> vector<8x8xf32>
    %cst_44 = arith.constant dense<0xFF800000> : vector<8xf32>
    %155 = vector.multi_reduction <maximumf>, %154, %cst_44 [1] : vector<8x8xf32> to vector<8xf32>
    %156 = vector.shape_cast %155 : vector<8xf32> to vector<8x1xf32>
    %157 = vector.broadcast %156 : vector<8x1xf32> to vector<8x8xf32>
    %158 = arith.subf %154, %157 : vector<8x8xf32>
    %159 = math.exp %158 : vector<8x8xf32>
    %cst_45 = arith.constant dense<0.000000e+00> : vector<8xf32>
    %160 = vector.multi_reduction <add>, %159, %cst_45 [1] : vector<8x8xf32> to vector<8xf32>
    %161 = vector.shape_cast %160 : vector<8xf32> to vector<8x1xf32>
    %162 = arith.truncf %159 : vector<8x8xf32> to vector<8x8xbf16>
    %cst_46 = arith.constant dense<0.000000e+00> : vector<8x4xf32>
    %163 = tpu.matmul %162, %153, %cst_46 {dimension_numbers = #tpu.dot_dimension_numbers<[1], [0], [0], [1], [0, 0, 1, 1], [], []>} : vector<8x8xbf16>, vector<8x4xbf16>, vector<8x4xf32> -> vector<8x4xf32>
    %164 = tpu.reciprocal %161 {approx = true} : vector<8x1xf32> -> vector<8x1xf32>
    %165 = vector.broadcast %164 : vector<8x1xf32> to vector<8x4xf32>
    %166 = arith.mulf %163, %165 : vector<8x4xf32>
    %167 = tpu.concatenate %54, %70, %86, %102, %118, %134, %150, %166 in 1 : vector<8x4xf32>, vector<8x4xf32>, vector<8x4xf32>, vector<8x4xf32>, vector<8x4xf32>, vector<8x4xf32>, vector<8x4xf32>, vector<8x4xf32> -> vector<8x32xf32>
    %168 = arith.addf %0, %167 : vector<8x32xf32>
    %c0_47 = arith.constant 0 : index
    %c0_48 = arith.constant 0 : index
    %169 = vector.load %arg6[%c0_47, %c0_48] : memref<1x32xf32, #tpu.memory_space<vmem>>, vector<1x32xf32>
    %c0_49 = arith.constant 0 : index
    %c0_50 = arith.constant 0 : index
    %170 = vector.load %arg7[%c0_49, %c0_50] : memref<1x32xf32, #tpu.memory_space<vmem>>, vector<1x32xf32>
    %cst_51 = arith.constant dense<0.000000e+00> : vector<8xf32>
    %171 = vector.multi_reduction <add>, %168, %cst_51 [1] : vector<8x32xf32> to vector<8xf32>
    %172 = vector.shape_cast %171 : vector<8xf32> to vector<8x1xf32>
    %173 = arith.mulf %168, %168 : vector<8x32xf32>
    %cst_52 = arith.constant dense<0.000000e+00> : vector<8xf32>
    %174 = vector.multi_reduction <add>, %173, %cst_52 [1] : vector<8x32xf32> to vector<8xf32>
    %175 = vector.shape_cast %174 : vector<8xf32> to vector<8x1xf32>
    %cst_53 = arith.constant 3.125000e-02 : f32
    %176 = vector.broadcast %cst_53 : f32 to vector<8x1xf32>
    %177 = arith.mulf %172, %176 : vector<8x1xf32>
    %cst_54 = arith.constant 3.125000e-02 : f32
    %178 = vector.broadcast %cst_54 : f32 to vector<8x1xf32>
    %179 = arith.mulf %175, %178 : vector<8x1xf32>
    %180 = arith.mulf %177, %177 : vector<8x1xf32>
    %181 = arith.subf %179, %180 : vector<8x1xf32>
    %182 = vector.broadcast %177 : vector<8x1xf32> to vector<8x32xf32>
    %183 = arith.subf %168, %182 : vector<8x32xf32>
    %cst_55 = arith.constant 9.99999997E-7 : f32
    %184 = vector.broadcast %cst_55 : f32 to vector<8x1xf32>
    %185 = arith.addf %181, %184 : vector<8x1xf32>
    %186 = math.rsqrt %185 : vector<8x1xf32>
    %187 = vector.broadcast %186 : vector<8x1xf32> to vector<8x32xf32>
    %188 = arith.mulf %183, %187 : vector<8x32xf32>
    %189 = vector.broadcast %169 : vector<1x32xf32> to vector<8x32xf32>
    %190 = arith.mulf %188, %189 : vector<8x32xf32>
    %191 = vector.broadcast %170 : vector<1x32xf32> to vector<8x32xf32>
    %192 = arith.addf %190, %191 : vector<8x32xf32>
    %c0_56 = arith.constant 0 : index
    %c0_57 = arith.constant 0 : index
    %193 = vector.load %arg8[%c0_56, %c0_57] : memref<32x128xbf16, #tpu.memory_space<vmem>>, vector<32x128xbf16>
    %c0_58 = arith.constant 0 : index
    %c0_59 = arith.constant 0 : index
    %194 = vector.load %arg9[%c0_58, %c0_59] : memref<1x128xf32, #tpu.memory_space<vmem>>, vector<1x128xf32>
    %c0_60 = arith.constant 0 : index
    %c0_61 = arith.constant 0 : index
    %195 = vector.load %arg10[%c0_60, %c0_61] : memref<128x32xbf16, #tpu.memory_space<vmem>>, vector<128x32xbf16>
    %c0_62 = arith.constant 0 : index
    %c0_63 = arith.constant 0 : index
    %196 = vector.load %arg11[%c0_62, %c0_63] : memref<1x32xf32, #tpu.memory_space<vmem>>, vector<1x32xf32>
    %197 = arith.truncf %192 : vector<8x32xf32> to vector<8x32xbf16>
    %cst_64 = arith.constant dense<0.000000e+00> : vector<8x128xf32>
    %198 = tpu.matmul %197, %193, %cst_64 {dimension_numbers = #tpu.dot_dimension_numbers<[1], [0], [0], [1], [0, 0, 1, 1], [], []>} : vector<8x32xbf16>, vector<32x128xbf16>, vector<8x128xf32> -> vector<8x128xf32>
    %199 = vector.broadcast %194 : vector<1x128xf32> to vector<8x128xf32>
    %200 = arith.addf %198, %199 : vector<8x128xf32>
    %cst_65 = arith.constant 0.000000e+00 : f32
    %201 = vector.broadcast %cst_65 : f32 to vector<8x128xf32>
    %202 = arith.maximumf %200, %201 : vector<8x128xf32>
    %203 = arith.truncf %202 : vector<8x128xf32> to vector<8x128xbf16>
    %cst_66 = arith.constant dense<0.000000e+00> : vector<8x32xf32>
    %204 = tpu.matmul %203, %195, %cst_66 {dimension_numbers = #tpu.dot_dimension_numbers<[1], [0], [0], [1], [0, 0, 1, 1], [], []>} : vector<8x128xbf16>, vector<128x32xbf16>, vector<8x32xf32> -> vector<8x32xf32>
    %205 = vector.broadcast %196 : vector<1x32xf32> to vector<8x32xf32>
    %206 = arith.addf %204, %205 : vector<8x32xf32>
    %207 = arith.addf %206, %168 : vector<8x32xf32>
    %c0_67 = arith.constant 0 : index
    %c0_68 = arith.constant 0 : index
    %208 = vector.load %arg12[%c0_67, %c0_68] : memref<8x32xf32, #tpu.memory_space<vmem>>, vector<8x32xf32>
    tpu.vector_store %arg12[%c0_67, %c0_68], %207 {strides = array<i32>} : memref<8x32xf32, #tpu.memory_space<vmem>>, vector<8x32xf32>,
    return
  }
  func.func @transform_0(%arg0: i32) -> (i32, i32) {
    %c0_i32 = arith.constant 0 : i32
    %c0_i32_0 = arith.constant 0 : i32
    %c0_i32_1 = arith.constant 0 : i32
    return %c0_i32, %c0_i32_0 : i32, i32
  }
  func.func @transform_1(%arg0: i32) -> (i32, i32) {
    %c0_i32 = arith.constant 0 : i32
    %c0_i32_0 = arith.constant 0 : i32
    %c0_i32_1 = arith.constant 0 : i32
    return %c0_i32, %c0_i32_0 : i32, i32
  }
  func.func @transform_2(%arg0: i32) -> (i32, i32) {
    %c0_i32 = arith.constant 0 : i32
    %c0_i32_0 = arith.constant 0 : i32
    %c0_i32_1 = arith.constant 0 : i32
    return %c0_i32, %c0_i32_0 : i32, i32
  }
  func.func @transform_3(%arg0: i32) -> (i32, i32) {
    %c0_i32 = arith.constant 0 : i32
    %c0_i32_0 = arith.constant 0 : i32
    %c0_i32_1 = arith.constant 0 : i32
    return %c0_i32, %c0_i32_0 : i32, i32
  }
  func.func @transform_4(%arg0: i32) -> (i32, i32) {
    %c0_i32 = arith.constant 0 : i32
    %c0_i32_0 = arith.constant 0 : i32
    %c0_i32_1 = arith.constant 0 : i32
    return %c0_i32, %c0_i32_0 : i32, i32
  }
  func.func @transform_5(%arg0: i32) -> (i32, i32) {
    %c0_i32 = arith.constant 0 : i32
    %c0_i32_0 = arith.constant 0 : i32
    %c0_i32_1 = arith.constant 0 : i32
    return %c0_i32, %c0_i32_0 : i32, i32
  }
  func.func @transform_6(%arg0: i32) -> (i32, i32) {
    %c0_i32 = arith.constant 0 : i32
    %c0_i32_0 = arith.constant 0 : i32
    %c0_i32_1 = arith.constant 0 : i32
    return %c0_i32, %c0_i32_0 : i32, i32
  }
  func.func @transform_7(%arg0: i32) -> (i32, i32) {
    %c0_i32 = arith.constant 0 : i32
    %c0_i32_0 = arith.constant 0 : i32
    %c0_i32_1 = arith.constant 0 : i32
    return %c0_i32, %c0_i32_0 : i32, i32
  }
  func.func @transform_8(%arg0: i32) -> (i32, i32) {
    %c0_i32 = arith.constant 0 : i32
    %c0_i32_0 = arith.constant 0 : i32
    %c0_i32_1 = arith.constant 0 : i32
    return %c0_i32, %c0_i32_0 : i32, i32
  }
  func.func @transform_9(%arg0: i32) -> (i32, i32) {
    %c0_i32 = arith.constant 0 : i32
    %c0_i32_0 = arith.constant 0 : i32
    %c0_i32_1 = arith.constant 0 : i32
    return %c0_i32, %c0_i32_0 : i32, i32
  }
  func.func @transform_10(%arg0: i32) -> (i32, i32) {
    %c0_i32 = arith.constant 0 : i32
    %c0_i32_0 = arith.constant 0 : i32
    %c0_i32_1 = arith.constant 0 : i32
    return %c0_i32, %c0_i32_0 : i32, i32
  }
  func.func @transform_11(%arg0: i32) -> (i32, i32) {
    %c0_i32 = arith.constant 0 : i32
    %c0_i32_0 = arith.constant 0 : i32
    %c0_i32_1 = arith.constant 0 : i32
    return %c0_i32, %c0_i32_0 : i32, i32
  }
}

</mosaic_0001>

<llo_original>
// kernel: tpu_custom_call.1
$region0: #{tpu_custom_call.1}
  #allocation0 [shape = 'u32[]', space=smem, size = 0x4, offset = 0x4, fixed_abs, tag = 'smem constant byte address 0x4 - core index']
  #allocation1 [shape = 'u32[72,128]{1,0:T(1,128)}', space=vmem, size = 0x9000, scoped, tag = 'internal scratch']
  %s0 = inlined_call_operand.vmem [shape: f32[8,32], index: 0, kind: input, shape index: {}]
  %s1 = inlined_call_operand.vmem [shape: f32[1,32], index: 1, kind: input, shape index: {}]
  %s2 = inlined_call_operand.vmem [shape: f32[1,32], index: 2, kind: input, shape index: {}]
  %s3 = inlined_call_operand.vmem [shape: bf16[32,96], index: 3, kind: input, shape index: {}]
  %s4 = inlined_call_operand.vmem [shape: f32[1,96], index: 4, kind: input, shape index: {}]
  %s5 = inlined_call_operand.vmem [shape: f32[1,32], index: 5, kind: input, shape index: {}]
  %s6 = inlined_call_operand.vmem [shape: f32[1,32], index: 6, kind: input, shape index: {}]
  %s7 = inlined_call_operand.vmem [shape: bf16[32,128], index: 7, kind: input, shape index: {}]
  %s8 = inlined_call_operand.vmem [shape: f32[1,128], index: 8, kind: input, shape index: {}]
  %s9 = inlined_call_operand.vmem [shape: bf16[128,32], index: 9, kind: input, shape index: {}]
  %s10 = inlined_call_operand.vmem [shape: f32[1,32], index: 10, kind: input, shape index: {}]
  %s11 = inlined_call_operand.hbm [shape: f32[8,32], index: 11, kind: output, shape index: {}]
  %s12 = sld [smem:[#allocation0]]
  $region54: #{tpu_custom_call.1} parent=0
    _
  %s14 = ssub.s32 1, %s12
  %s15 = scalar_select 0, %s14, %s12
  $region1: #{tpu_custom_call.1} parent=0
    #allocation2 [shape = 'u8[4096]{0}', space=vmem, size = 0x1000, scoped, tag = 'output window, operand 0, single buffered']
    #allocation3 [shape = 's32[1]{0}', space=sflag, size = 0x4, scoped, tag = 'scoped memory for tpu_custom_call.1']
    %16 = vsyncpa [#allocation3], 0
    // Predicated region
    $region2: #{tpu_custom_call.1} parent=1 // pred_check
      _
    $region3: #{tpu_custom_call.1} parent=1 // pred_check_branch
      %18 = sbr.rel (0) target = $region5
    $region4: #{tpu_custom_call.1} parent=1 // pred_region
      _
    $region5: #{tpu_custom_call.1} parent=1 // pred_fallthru
      _
    // Predicated region
    $region6: #{tpu_custom_call.1} parent=1 // pred_check
      _
    $region7: #{tpu_custom_call.1} parent=1 // pred_check_branch
      %20 = sbr.rel (0) target = $region9
    $region8: #{tpu_custom_call.1} parent=1 // pred_region
      _
    $region9: #{tpu_custom_call.1} parent=1 // pred_fallthru
      _
    // Predicated region
    $region10: #{tpu_custom_call.1} parent=1 // pred_check
      _
    $region11: #{tpu_custom_call.1} parent=1 // pred_check_branch
      %22 = sbr.rel (0) target = $region13
    $region12: #{tpu_custom_call.1} parent=1 // pred_region
      _
    $region13: #{tpu_custom_call.1} parent=1 // pred_fallthru
      _
    // Predicated region
    $region14: #{tpu_custom_call.1} parent=1 // pred_check
      _
    $region15: #{tpu_custom_call.1} parent=1 // pred_check_branch
      %24 = sbr.rel (0) target = $region17
    $region16: #{tpu_custom_call.1} parent=1 // pred_region
      _
    $region17: #{tpu_custom_call.1} parent=1 // pred_fallthru
      _
    // Predicated region
    $region18: #{tpu_custom_call.1} parent=1 // pred_check
      _
    $region19: #{tpu_custom_call.1} parent=1 // pred_check_branch
      %26 = sbr.rel (0) target = $region21
    $region20: #{tpu_custom_call.1} parent=1 // pred_region
      _
    $region21: #{tpu_custom_call.1} parent=1 // pred_fallthru
      _
    // Predicated region
    $region22: #{tpu_custom_call.1} parent=1 // pred_check
      _
    $region23: #{tpu_custom_call.1} parent=1 // pred_check_branch
      %28 = sbr.rel (0) target = $region25
    $region24: #{tpu_custom_call.1} parent=1 // pred_region
      _
    $region25: #{tpu_custom_call.1} parent=1 // pred_fallthru
      _
    // Predicated region
    $region26: #{tpu_custom_call.1} parent=1 // pred_check
      _
    $region27: #{tpu_custom_call.1} parent=1 // pred_check_branch
      %30 = sbr.rel (0) target = $region29
    $region28: #{tpu_custom_call.1} parent=1 // pred_region
      _
    $region29: #{tpu_custom_call.1} parent=1 // pred_fallthru
      _
    // Predicated region
    $region30: #{tpu_custom_call.1} parent=1 // pred_check
      _
    $region31: #{tpu_custom_call.1} parent=1 // pred_check_branch
      %32 = sbr.rel (0) target = $region33
    $region32: #{tpu_custom_call.1} parent=1 // pred_region
      _
    $region33: #{tpu_custom_call.1} parent=1 // pred_fallthru
      _
    // Predicated region
    $region34: #{tpu_custom_call.1} parent=1 // pred_check
      _
    $region35: #{tpu_custom_call.1} parent=1 // pred_check_branch
      %34 = sbr.rel (0) target = $region37
    $region36: #{tpu_custom_call.1} parent=1 // pred_region
      _
    $region37: #{tpu_custom_call.1} parent=1 // pred_fallthru
      _
    // Predicated region
    $region38: #{tpu_custom_call.1} parent=1 // pred_check
      _
    $region39: #{tpu_custom_call.1} parent=1 // pred_check_branch
      %36 = sbr.rel (0) target = $region41
    $region40: #{tpu_custom_call.1} parent=1 // pred_region
      _
    $region41: #{tpu_custom_call.1} parent=1 // pred_fallthru
      _
    // Predicated region
    $region42: #{tpu_custom_call.1} parent=1 // pred_check
      _
    $region43: #{tpu_custom_call.1} parent=1 // pred_check_branch
      %38 = sbr.rel (0) target = $region45
    $region44: #{tpu_custom_call.1} parent=1 // pred_region
      _
    $region45: #{tpu_custom_call.1} parent=1 // pred_fallthru
      _
    %v40 = vld [vmem:[%s0] sm:$0xff]
    %v41 = vld [vmem:[%s1] sm:$0x1]
    %v42 = vld [vmem:[%s2] sm:$0x1]
    %vm43 = vcmask 261120
    %v44 = vsel %vm43, %v40, 0.0
    %45 = vadd.xlane.f32.xlu0 %v44
    %v46 = vpop.xlane.xlu0 %45
    %v47 = vmul.f32 %v40, %v40
    %v48 = vsel %vm43, %v47, 0.0
    %49 = vadd.xlane.f32.xlu0 %v48
    %v50 = vpop.xlane.xlu0 %49
    %v51 = vmul.f32 %v46, 0.03125
    %v52 = vmul.f32 %v50, 0.03125
    %v53 = vmul.f32 %v51, %v51
    %v54 = vsub.f32 %v52, %v53
    %v55 = vsub.f32 %v40, %v51
    %v56 = vadd.f32 %v54, 1e-06
    %v57 = vrsqrt.pop %v56
    %v58 = vmul.f32 %v57, %v56
    %v59 = vmul.f32 %v58, %v57
    %v60 = vmul.f32 0.5, %v59
    %v61 = vsub.f32 1.5, %v60
    %v62 = vmul.f32 %v57, %v61
    %vm63 = vweird.f32 %v56
    %vm64 = vweird.f32 %v57
    %vm65 = vmor %vm63, %vm64
    %v66 = vsel %vm65, %v57, %v62
    %v67 = vmul.f32 %v55, %v66
    %v69 = vperm.slane %v41, 0
    %v71 = vmul.f32 %v67, %v69
    %v73 = vperm.slane %v42, 0
    %v75 = vadd.f32 %v71, %v73
    %v76 = vpack.c.bf16 %v75, %v75
    %v77 = vld [vmem:[%s3] sm:$0xf]
    %v78 = vld [vmem:[%s3 + $0x4] sm:$0xf]
    %v79 = vld [vmem:[%s3 + $0x8] sm:$0xf]
    %v80 = vld [vmem:[%s3 + $0xc] sm:$0xf]
    %v81 = vld [vmem:[%s4] sm:$0x1]
    %v83 = vperm.slane %v81, 0
    %v89 = vunpack.c.l.b16 %v77
    %v90 = vunpack.c.l.b16 %v78
    %v91 = vunpack.c.l.b16 %v79
    %v92 = vunpack.c.l.b16 %v80
    %v93 = vpack.c.b16 %v90, %v89
    %v94 = vpack.c.b16 %v92, %v91
    %v98 = vsel %vm43, %v76, 0
    %100 = vmatpush.bf16.msra.mxu0 0
    %101 = vmatpush.bf16.msra.mxu0 0
    %102 = vmatpush.bf16.msra.mxu0 0
    %103 = vmatpush.bf16.msra.mxu0 0
    %104 = vmatpush.bf16.msra.mxu0 0
    %105 = vmatpush.bf16.msra.mxu0 0
    %106 = vmatpush.bf16.msra.mxu0 %v94
    %107 = vmatpush.bf16.msra.mxu0 %v93
    %108 = vmatmul.bf16.gmra.mxu0 %v98
    %v109 = vpop.f32.mrf.mxu0
    %v110 = vadd.f32 %v83, %v109
    %v111 = vpop.f32.mrf.mxu0
    %112 = vdwg.mxu0
    %v113 = vmul.f32 %v110, 0.5
    %v114 = vpack.c.bf16 %v113, %v113
    %v115 = vpack.c.bf16 %v110, %v110
    %v117 = vunpack.c.l.b16 %v115
    %v118 = vpack.c.b16 %v117, %v117
    %119 = vrot.lane.b32.xlu0 %v118, 96
    %v120 = vpop.permute.xlu0 %119
    %vm121 = vcmask 31744
    %v123 = vsel %vm121, %v114, 0
    %v126 = vsel %vm121, %v120, 0
    %128 = vmatpush.bf16.xpose.msra.mxu0 0
    %129 = vmatpush.bf16.xpose.msra.mxu0 0
    %130 = vmatpush.bf16.xpose.msra.mxu0 0
    %131 = vmatpush.bf16.xpose.msra.mxu0 0
    %132 = vmatpush.bf16.xpose.msra.mxu0 0
    %133 = vmatpush.bf16.xpose.msra.mxu0 0
    %134 = vmatpush.bf16.xpose.msra.mxu0 0
    %135 = vmatpush.bf16.xpose.msra.mxu0 %v126
    %136 = vmatmul.bf16.gmra.mxu0 %v123
    %v137 = vpop.f32.mrf.mxu0
    %v138 = vadd.f32 0.0, %v137
    %v139 = vpop.f32.mrf.mxu0
    %140 = vdwg.mxu0
    %vm141 = vcmask 64512
    %v142 = vsel %vm141, %v138, -inf
    %143 = vmax.xlane.f32.xlu0 %v142
    %v144 = vpop.xlane.xlu0 %143
    %v145 = vsub.f32 %v138, %v144
    %v146 = vmul.f32 %v145, 1.442695
    %v147 = vpow.pop %v146
    %v148 = vsel %vm141, %v147, 0.0
    %149 = vadd.xlane.f32.xlu0 %v148
    %v150 = vpop.xlane.xlu0 %149
    %v151 = vpack.c.bf16 %v147, %v147
    %152 = vrot.lane.b32.xlu0 %v118, 64
    %v153 = vpop.permute.xlu0 %152
    %v155 = vsel %vm141, %v151, 0
    %vm157 = vcmask 1043456
    %v159 = vsel %vm157, %v153, 0
    %161 = vmatpush.bf16.msra.mxu0 0
    %162 = vmatpush.bf16.msra.mxu0 0
    %163 = vmatpush.bf16.msra.mxu0 0
    %164 = vmatpush.bf16.msra.mxu0 0
    %165 = vmatpush.bf16.msra.mxu0 0
    %166 = vmatpush.bf16.msra.mxu0 0
    %167 = vmatpush.bf16.msra.mxu0 0
    %168 = vmatpush.bf16.msra.mxu0 %v159
    %169 = vmatmul.bf16.gmra.mxu0 %v155
    %v170 = vpop.f32.mrf.mxu0
    %v171 = vadd.f32 0.0, %v170
    %v172 = vpop.f32.mrf.mxu0
    %173 = vdwg.mxu0
    %v174 = vrcp.pop %v150
    %v175 = vmul.f32 %v171, %v174
    %v177 = vunpack.c.l.b16 %v114
    %v178 = vpack.c.b16 %v177, %v177
    %179 = vrot.lane.b32.xlu0 %v178, 124
    %v180 = vpop.permute.xlu0 %179
    %181 = vrot.lane.b32.xlu0 %v118, 92
    %v182 = vpop.permute.xlu0 %181
    %v184 = vsel %vm121, %v180, 0
    %v187 = vsel %vm121, %v182, 0
    %189 = vmatpush.bf16.xpose.msra.mxu0 0
    %190 = vmatpush.bf16.xpose.msra.mxu0 0
    %191 = vmatpush.bf16.xpose.msra.mxu0 0
    %192 = vmatpush.bf16.xpose.msra.mxu0 0
    %193 = vmatpush.bf16.xpose.msra.mxu0 0
    %194 = vmatpush.bf16.xpose.msra.mxu0 0
    %195 = vmatpush.bf16.xpose.msra.mxu0 0
    %196 = vmatpush.bf16.xpose.msra.mxu0 %v187
    %197 = vmatmul.bf16.gmra.mxu0 %v184
    %v198 = vpop.f32.mrf.mxu0
    %v199 = vadd.f32 0.0, %v198
    %v200 = vpop.f32.mrf.mxu0
    %201 = vdwg.mxu0
    %v202 = vsel %vm141, %v199, -inf
    %203 = vmax.xlane.f32.xlu0 %v202
    %v204 = vpop.xlane.xlu0 %203
    %v205 = vsub.f32 %v199, %v204
    %v206 = vmul.f32 %v205, 1.442695
    %v207 = vpow.pop %v206
    %v208 = vsel %vm141, %v207, 0.0
    %209 = vadd.xlane.f32.xlu0 %v208
    %v210 = vpop.xlane.xlu0 %209
    %v211 = vpack.c.bf16 %v207, %v207
    %212 = vrot.lane.b32.xlu0 %v118, 60
    %v213 = vpop.permute.xlu0 %212
    %v215 = vsel %vm141, %v211, 0
    %v218 = vsel %vm157, %v213, 0
    %220 = vmatpush.bf16.msra.mxu0 0
    %221 = vmatpush.bf16.msra.mxu0 0
    %222 = vmatpush.bf16.msra.mxu0 0
    %223 = vmatpush.bf16.msra.mxu0 0
    %224 = vmatpush.bf16.msra.mxu0 0
    %225 = vmatpush.bf16.msra.mxu0 0
    %226 = vmatpush.bf16.msra.mxu0 0
    %227 = vmatpush.bf16.msra.mxu0 %v218
    %228 = vmatmul.bf16.gmra.mxu0 %v215
    %v229 = vpop.f32.mrf.mxu0
    %v230 = vadd.f32 0.0, %v229
    %v231 = vpop.f32.mrf.mxu0
    %232 = vdwg.mxu0
    %v233 = vrcp.pop %v210
    %v234 = vmul.f32 %v230, %v233
    %235 = vrot.lane.b32.xlu0 %v178, 120
    %v236 = vpop.permute.xlu0 %235
    %237 = vrot.lane.b32.xlu0 %v118, 88
    %v238 = vpop.permute.xlu0 %237
    %v240 = vsel %vm121, %v236, 0
    %v243 = vsel %vm121, %v238, 0
    %245 = vmatpush.bf16.xpose.msra.mxu0 0
    %246 = vmatpush.bf16.xpose.msra.mxu0 0
    %247 = vmatpush.bf16.xpose.msra.mxu0 0
    %248 = vmatpush.bf16.xpose.msra.mxu0 0
    %249 = vmatpush.bf16.xpose.msra.mxu0 0
    %250 = vmatpush.bf16.xpose.msra.mxu0 0
    %251 = vmatpush.bf16.xpose.msra.mxu0 0
    %252 = vmatpush.bf16.xpose.msra.mxu0 %v243
    %253 = vmatmul.bf16.gmra.mxu0 %v240
    %v254 = vpop.f32.mrf.mxu0
    %v255 = vadd.f32 0.0, %v254
    %v256 = vpop.f32.mrf.mxu0
    %257 = vdwg.mxu0
    %v258 = vsel %vm141, %v255, -inf
    %259 = vmax.xlane.f32.xlu0 %v258
    %v260 = vpop.xlane.xlu0 %259
    %v261 = vsub.f32 %v255, %v260
    %v262 = vmul.f32 %v261, 1.442695
    %v263 = vpow.pop %v262
    %v264 = vsel %vm141, %v263, 0.0
    %265 = vadd.xlane.f32.xlu0 %v264
    %v266 = vpop.xlane.xlu0 %265
    %v267 = vpack.c.bf16 %v263, %v263
    %268 = vrot.lane.b32.xlu0 %v118, 56
    %v269 = vpop.permute.xlu0 %268
    %v271 = vsel %vm141, %v267, 0
    %v274 = vsel %vm157, %v269, 0
    %276 = vmatpush.bf16.msra.mxu0 0
    %277 = vmatpush.bf16.msra.mxu0 0
    %278 = vmatpush.bf16.msra.mxu0 0
    %279 = vmatpush.bf16.msra.mxu0 0
    %280 = vmatpush.bf16.msra.mxu0 0
    %281 = vmatpush.bf16.msra.mxu0 0
    %282 = vmatpush.bf16.msra.mxu0 0
    %283 = vmatpush.bf16.msra.mxu0 %v274
    %284 = vmatmul.bf16.gmra.mxu0 %v271
    %v285 = vpop.f32.mrf.mxu0
    %v286 = vadd.f32 0.0, %v285
    %v287 = vpop.f32.mrf.mxu0
    %288 = vdwg.mxu0
    %v289 = vrcp.pop %v266
    %v290 = vmul.f32 %v286, %v289
    %291 = vrot.lane.b32.xlu0 %v178, 116
    %v292 = vpop.permute.xlu0 %291
    %293 = vrot.lane.b32.xlu0 %v118, 84
    %v294 = vpop.permute.xlu0 %293
    %v296 = vsel %vm121, %v292, 0
    %v299 = vsel %vm121, %v294, 0
    %301 = vmatpush.bf16.xpose.msra.mxu0 0
    %302 = vmatpush.bf16.xpose.msra.mxu0 0
    %303 = vmatpush.bf16.xpose.msra.mxu0 0
    %304 = vmatpush.bf16.xpose.msra.mxu0 0
    %305 = vmatpush.bf16.xpose.msra.mxu0 0
    %306 = vmatpush.bf16.xpose.msra.mxu0 0
    %307 = vmatpush.bf16.xpose.msra.mxu0 0
    %308 = vmatpush.bf16.xpose.msra.mxu0 %v299
    %309 = vmatmul.bf16.gmra.mxu0 %v296
    %v310 = vpop.f32.mrf.mxu0
    %v311 = vadd.f32 0.0, %v310
    %v312 = vpop.f32.mrf.mxu0
    %313 = vdwg.mxu0
    %v314 = vsel %vm141, %v311, -inf
    %315 = vmax.xlane.f32.xlu0 %v314
    %v316 = vpop.xlane.xlu0 %315
    %v317 = vsub.f32 %v311, %v316
    %v318 = vmul.f32 %v317, 1.442695
    %v319 = vpow.pop %v318
    %v320 = vsel %vm141, %v319, 0.0
    %321 = vadd.xlane.f32.xlu0 %v320
    %v322 = vpop.xlane.xlu0 %321
    %v323 = vpack.c.bf16 %v319, %v319
    %324 = vrot.lane.b32.xlu0 %v118, 52
    %v325 = vpop.permute.xlu0 %324
    %v327 = vsel %vm141, %v323, 0
    %v330 = vsel %vm157, %v325, 0
    %332 = vmatpush.bf16.msra.mxu0 0
    %333 = vmatpush.bf16.msra.mxu0 0
    %334 = vmatpush.bf16.msra.mxu0 0
    %335 = vmatpush.bf16.msra.mxu0 0
    %336 = vmatpush.bf16.msra.mxu0 0
    %337 = vmatpush.bf16.msra.mxu0 0
    %338 = vmatpush.bf16.msra.mxu0 0
    %339 = vmatpush.bf16.msra.mxu0 %v330
    %340 = vmatmul.bf16.gmra.mxu0 %v327
    %v341 = vpop.f32.mrf.mxu0
    %v342 = vadd.f32 0.0, %v341
    %v343 = vpop.f32.mrf.mxu0
    %344 = vdwg.mxu0
    %v345 = vrcp.pop %v322
    %v346 = vmul.f32 %v342, %v345
    %347 = vrot.lane.b32.xlu0 %v178, 112
    %v348 = vpop.permute.xlu0 %347
    %349 = vrot.lane.b32.xlu0 %v118, 80
    %v350 = vpop.permute.xlu0 %349
    %v352 = vsel %vm121, %v348, 0
    %v355 = vsel %vm121, %v350, 0
    %357 = vmatpush.bf16.xpose.msra.mxu0 0
    %358 = vmatpush.bf16.xpose.msra.mxu0 0
    %359 = vmatpush.bf16.xpose.msra.mxu0 0
    %360 = vmatpush.bf16.xpose.msra.mxu0 0
    %361 = vmatpush.bf16.xpose.msra.mxu0 0
    %362 = vmatpush.bf16.xpose.msra.mxu0 0
    %363 = vmatpush.bf16.xpose.msra.mxu0 0
    %364 = vmatpush.bf16.xpose.msra.mxu0 %v355
    %365 = vmatmul.bf16.gmra.mxu0 %v352
    %v366 = vpop.f32.mrf.mxu0
    %v367 = vadd.f32 0.0, %v366
    %v368 = vpop.f32.mrf.mxu0
    %369 = vdwg.mxu0
    %v370 = vsel %vm141, %v367, -inf
    %371 = vmax.xlane.f32.xlu0 %v370
    %v372 = vpop.xlane.xlu0 %371
    %v373 = vsub.f32 %v367, %v372
    %v374 = vmul.f32 %v373, 1.442695
    %v375 = vpow.pop %v374
    %v376 = vsel %vm141, %v375, 0.0
    %377 = vadd.xlane.f32.xlu0 %v376
    %v378 = vpop.xlane.xlu0 %377
    %v379 = vpack.c.bf16 %v375, %v375
    %380 = vrot.lane.b32.xlu0 %v118, 48
    %v381 = vpop.permute.xlu0 %380
    %v383 = vsel %vm141, %v379, 0
    %v386 = vsel %vm157, %v381, 0
    %388 = vmatpush.bf16.msra.mxu0 0
    %389 = vmatpush.bf16.msra.mxu0 0
    %390 = vmatpush.bf16.msra.mxu0 0
    %391 = vmatpush.bf16.msra.mxu0 0
    %392 = vmatpush.bf16.msra.mxu0 0
    %393 = vmatpush.bf16.msra.mxu0 0
    %394 = vmatpush.bf16.msra.mxu0 0
    %395 = vmatpush.bf16.msra.mxu0 %v386
    %396 = vmatmul.bf16.gmra.mxu0 %v383
    %v397 = vpop.f32.mrf.mxu0
    %v398 = vadd.f32 0.0, %v397
    %v399 = vpop.f32.mrf.mxu0
    %400 = vdwg.mxu0
    %v401 = vrcp.pop %v378
    %v402 = vmul.f32 %v398, %v401
    %403 = vrot.lane.b32.xlu0 %v178, 108
    %v404 = vpop.permute.xlu0 %403
    %405 = vrot.lane.b32.xlu0 %v118, 76
    %v406 = vpop.permute.xlu0 %405
    %v408 = vsel %vm121, %v404, 0
    %v411 = vsel %vm121, %v406, 0
    %413 = vmatpush.bf16.xpose.msra.mxu0 0
    %414 = vmatpush.bf16.xpose.msra.mxu0 0
    %415 = vmatpush.bf16.xpose.msra.mxu0 0
    %416 = vmatpush.bf16.xpose.msra.mxu0 0
    %417 = vmatpush.bf16.xpose.msra.mxu0 0
    %418 = vmatpush.bf16.xpose.msra.mxu0 0
    %419 = vmatpush.bf16.xpose.msra.mxu0 0
    %420 = vmatpush.bf16.xpose.msra.mxu0 %v411
    %421 = vmatmul.bf16.gmra.mxu0 %v408
    %v422 = vpop.f32.mrf.mxu0
    %v423 = vadd.f32 0.0, %v422
    %v424 = vpop.f32.mrf.mxu0
    %425 = vdwg.mxu0
    %v426 = vsel %vm141, %v423, -inf
    %427 = vmax.xlane.f32.xlu0 %v426
    %v428 = vpop.xlane.xlu0 %427
    %v429 = vsub.f32 %v423, %v428
    %v430 = vmul.f32 %v429, 1.442695
    %v431 = vpow.pop %v430
    %v432 = vsel %vm141, %v431, 0.0
    %433 = vadd.xlane.f32.xlu0 %v432
    %v434 = vpop.xlane.xlu0 %433
    %v435 = vpack.c.bf16 %v431, %v431
    %436 = vrot.lane.b32.xlu0 %v118, 44
    %v437 = vpop.permute.xlu0 %436
    %v439 = vsel %vm141, %v435, 0
    %v442 = vsel %vm157, %v437, 0
    %444 = vmatpush.bf16.msra.mxu0 0
    %445 = vmatpush.bf16.msra.mxu0 0
    %446 = vmatpush.bf16.msra.mxu0 0
    %447 = vmatpush.bf16.msra.mxu0 0
    %448 = vmatpush.bf16.msra.mxu0 0
    %449 = vmatpush.bf16.msra.mxu0 0
    %450 = vmatpush.bf16.msra.mxu0 0
    %451 = vmatpush.bf16.msra.mxu0 %v442
    %452 = vmatmul.bf16.gmra.mxu0 %v439
    %v453 = vpop.f32.mrf.mxu0
    %v454 = vadd.f32 0.0, %v453
    %v455 = vpop.f32.mrf.mxu0
    %456 = vdwg.mxu0
    %v457 = vrcp.pop %v434
    %v458 = vmul.f32 %v454, %v457
    %459 = vrot.lane.b32.xlu0 %v178, 104
    %v460 = vpop.permute.xlu0 %459
    %461 = vrot.lane.b32.xlu0 %v118, 72
    %v462 = vpop.permute.xlu0 %461
    %v464 = vsel %vm121, %v460, 0
    %v467 = vsel %vm121, %v462, 0
    %469 = vmatpush.bf16.xpose.msra.mxu0 0
    %470 = vmatpush.bf16.xpose.msra.mxu0 0
    %471 = vmatpush.bf16.xpose.msra.mxu0 0
    %472 = vmatpush.bf16.xpose.msra.mxu0 0
    %473 = vmatpush.bf16.xpose.msra.mxu0 0
    %474 = vmatpush.bf16.xpose.msra.mxu0 0
    %475 = vmatpush.bf16.xpose.msra.mxu0 0
    %476 = vmatpush.bf16.xpose.msra.mxu0 %v467
    %477 = vmatmul.bf16.gmra.mxu0 %v464
    %v478 = vpop.f32.mrf.mxu0
    %v479 = vadd.f32 0.0, %v478
    %v480 = vpop.f32.mrf.mxu0
    %481 = vdwg.mxu0
    %v482 = vsel %vm141, %v479, -inf
    %483 = vmax.xlane.f32.xlu0 %v482
    %v484 = vpop.xlane.xlu0 %483
    %v485 = vsub.f32 %v479, %v484
    %v486 = vmul.f32 %v485, 1.442695
    %v487 = vpow.pop %v486
    %v488 = vsel %vm141, %v487, 0.0
    %489 = vadd.xlane.f32.xlu0 %v488
    %v490 = vpop.xlane.xlu0 %489
    %v491 = vpack.c.bf16 %v487, %v487
    %492 = vrot.lane.b32.xlu0 %v118, 40
    %v493 = vpop.permute.xlu0 %492
    %v495 = vsel %vm141, %v491, 0
    %v498 = vsel %vm157, %v493, 0
    %500 = vmatpush.bf16.msra.mxu0 0
    %501 = vmatpush.bf16.msra.mxu0 0
    %502 = vmatpush.bf16.msra.mxu0 0
    %503 = vmatpush.bf16.msra.mxu0 0
    %504 = vmatpush.bf16.msra.mxu0 0
    %505 = vmatpush.bf16.msra.mxu0 0
    %506 = vmatpush.bf16.msra.mxu0 0
    %507 = vmatpush.bf16.msra.mxu0 %v498
    %508 = vmatmul.bf16.gmra.mxu0 %v495
    %v509 = vpop.f32.mrf.mxu0
    %v510 = vadd.f32 0.0, %v509
    %v511 = vpop.f32.mrf.mxu0
    %512 = vdwg.mxu0
    %v513 = vrcp.pop %v490
    %v514 = vmul.f32 %v510, %v513
    %515 = vrot.lane.b32.xlu0 %v178, 100
    %v516 = vpop.permute.xlu0 %515
    %517 = vrot.lane.b32.xlu0 %v118, 68
    %v518 = vpop.permute.xlu0 %517
    %v520 = vsel %vm121, %v516, 0
    %v523 = vsel %vm121, %v518, 0
    %525 = vmatpush.bf16.xpose.msra.mxu0 0
    %526 = vmatpush.bf16.xpose.msra.mxu0 0
    %527 = vmatpush.bf16.xpose.msra.mxu0 0
    %528 = vmatpush.bf16.xpose.msra.mxu0 0
    %529 = vmatpush.bf16.xpose.msra.mxu0 0
    %530 = vmatpush.bf16.xpose.msra.mxu0 0
    %531 = vmatpush.bf16.xpose.msra.mxu0 0
    %532 = vmatpush.bf16.xpose.msra.mxu0 %v523
    %533 = vmatmul.bf16.gmra.mxu0 %v520
    %v534 = vpop.f32.mrf.mxu0
    %v535 = vadd.f32 0.0, %v534
    %v536 = vpop.f32.mrf.mxu0
    %537 = vdwg.mxu0
    %v538 = vsel %vm141, %v535, -inf
    %539 = vmax.xlane.f32.xlu0 %v538
    %v540 = vpop.xlane.xlu0 %539
    %v541 = vsub.f32 %v535, %v540
    %v542 = vmul.f32 %v541, 1.442695
    %v543 = vpow.pop %v542
    %v544 = vsel %vm141, %v543, 0.0
    %545 = vadd.xlane.f32.xlu0 %v544
    %v546 = vpop.xlane.xlu0 %545
    %v547 = vpack.c.bf16 %v543, %v543
    %548 = vrot.lane.b32.xlu0 %v118, 36
    %v549 = vpop.permute.xlu0 %548
    %v551 = vsel %vm141, %v547, 0
    %v554 = vsel %vm157, %v549, 0
    %556 = vmatpush.bf16.msra.mxu0 0
    %557 = vmatpush.bf16.msra.mxu0 0
    %558 = vmatpush.bf16.msra.mxu0 0
    %559 = vmatpush.bf16.msra.mxu0 0
    %560 = vmatpush.bf16.msra.mxu0 0
    %561 = vmatpush.bf16.msra.mxu0 0
    %562 = vmatpush.bf16.msra.mxu0 0
    %563 = vmatpush.bf16.msra.mxu0 %v554
    %564 = vmatmul.bf16.gmra.mxu0 %v551
    %v565 = vpop.f32.mrf.mxu0
    %v566 = vadd.f32 0.0, %v565
    %v567 = vpop.f32.mrf.mxu0
    %568 = vdwg.mxu0
    %v569 = vrcp.pop %v546
    %v570 = vmul.f32 %v566, %v569
    %572 = vrot.lane.b32.xlu0 %v234, 4
    %v573 = vpop.permute.xlu0 %572
    %576 = vrot.lane.b32.xlu0 %v290, 8
    %v577 = vpop.permute.xlu0 %576
    %580 = vrot.lane.b32.xlu0 %v346, 12
    %v581 = vpop.permute.xlu0 %580
    %584 = vrot.lane.b32.xlu0 %v402, 16
    %v585 = vpop.permute.xlu0 %584
    %588 = vrot.lane.b32.xlu0 %v458, 20
    %v589 = vpop.permute.xlu0 %588
    %592 = vrot.lane.b32.xlu0 %v514, 24
    %v593 = vpop.permute.xlu0 %592
    %596 = vrot.lane.b32.xlu0 %v570, 28
    %v597 = vpop.permute.xlu0 %596
    %v599 = vsel %vm121, %v175, %v573
    %v600 = vsel %vm141, %v599, %v577
    %vm601 = vcmask 97280
    %v602 = vsel %vm601, %v600, %v581
    %vm603 = vcmask 130048
    %v604 = vsel %vm603, %v602, %v585
    %vm605 = vcmask 162816
    %v606 = vsel %vm605, %v604, %v589
    %vm607 = vcmask 195584
    %v608 = vsel %vm607, %v606, %v593
    %vm609 = vcmask 228352
    %v610 = vsel %vm609, %v608, %v597
    %v611 = vadd.f32 %v40, %v610
    %v612 = vld [vmem:[%s5] sm:$0x1]
    %v613 = vld [vmem:[%s6] sm:$0x1]
    %v614 = vsel %vm43, %v611, 0.0
    %615 = vadd.xlane.f32.xlu0 %v614
    %v616 = vpop.xlane.xlu0 %615
    %v617 = vmul.f32 %v611, %v611
    %v618 = vsel %vm43, %v617, 0.0
    %619 = vadd.xlane.f32.xlu0 %v618
    %v620 = vpop.xlane.xlu0 %619
    %v621 = vmul.f32 %v616, 0.03125
    %v622 = vmul.f32 %v620, 0.03125
    %v623 = vmul.f32 %v621, %v621
    %v624 = vsub.f32 %v622, %v623
    %v625 = vsub.f32 %v611, %v621
    %v626 = vadd.f32 %v624, 1e-06
    %v627 = vrsqrt.pop %v626
    %v628 = vmul.f32 %v627, %v626
    %v629 = vmul.f32 %v628, %v627
    %v630 = vmul.f32 0.5, %v629
    %v631 = vsub.f32 1.5, %v630
    %v632 = vmul.f32 %v627, %v631
    %vm633 = vweird.f32 %v626
    %vm634 = vweird.f32 %v627
    %vm635 = vmor %vm633, %vm634
    %v636 = vsel %vm635, %v627, %v632
    %v637 = vmul.f32 %v625, %v636
    %v639 = vperm.slane %v612, 0
    %v641 = vmul.f32 %v637, %v639
    %v643 = vperm.slane %v613, 0
    %v645 = vadd.f32 %v641, %v643
    %v646 = vld [vmem:[%s7] sm:$0xf]
    %v647 = vld [vmem:[%s7 + $0x4] sm:$0xf]
    %v648 = vld [vmem:[%s7 + $0x8] sm:$0xf]
    %v649 = vld [vmem:[%s7 + $0xc] sm:$0xf]
    %v650 = vld [vmem:[%s8] sm:$0x1]
    %v651 = vld [vmem:[%s9] sm:$0xf]
    %v652 = vld [vmem:[%s9 + $0x4] sm:$0xf]
    %v653 = vld [vmem:[%s9 + $0x8] sm:$0xf]
    %v654 = vld [vmem:[%s9 + $0xc] sm:$0xf]
    %v655 = vld [vmem:[%s9 + $0x10] sm:$0xf]
    %v656 = vld [vmem:[%s9 + $0x14] sm:$0xf]
    %v657 = vld [vmem:[%s9 + $0x18] sm:$0xf]
    %v658 = vld [vmem:[%s9 + $0x1c] sm:$0xf]
    %v659 = vld [vmem:[%s9 + $0x20] sm:$0xf]
    %v660 = vld [vmem:[%s9 + $0x24] sm:$0xf]
    %v661 = vld [vmem:[%s9 + $0x28] sm:$0xf]
    %v662 = vld [vmem:[%s9 + $0x2c] sm:$0xf]
    %v663 = vld [vmem:[%s9 + $0x30] sm:$0xf]
    %v664 = vld [vmem:[%s9 + $0x34] sm:$0xf]
    %v665 = vld [vmem:[%s9 + $0x38] sm:$0xf]
    %v666 = vld [vmem:[%s9 + $0x3c] sm:$0xf]
    %v667 = vld [vmem:[%s10] sm:$0x1]
    %v668 = vpack.c.bf16 %v645, %v645
    %v670 = vperm.slane %v650, 0
    %v676 = vunpack.c.l.b16 %v646
    %v677 = vunpack.c.l.b16 %v647
    %v678 = vunpack.c.l.b16 %v648
    %v679 = vunpack.c.l.b16 %v649
    %v680 = vpack.c.b16 %v677, %v676
    %v681 = vpack.c.b16 %v679, %v678
    %v685 = vsel %vm43, %v668, 0
    %687 = vmatpush.bf16.msra.mxu0 0
    %688 = vmatpush.bf16.msra.mxu0 0
    %689 = vmatpush.bf16.msra.mxu0 0
    %690 = vmatpush.bf16.msra.mxu0 0
    %691 = vmatpush.bf16.msra.mxu0 0
    %692 = vmatpush.bf16.msra.mxu0 0
    %693 = vmatpush.bf16.msra.mxu0 %v681
    %694 = vmatpush.bf16.msra.mxu0 %v680
    %695 = vmatmul.bf16.gmra.mxu0 %v685
    %v696 = vpop.f32.mrf.mxu0
    %v697 = vadd.f32 %v670, %v696
    %v698 = vpop.f32.mrf.mxu0
    %699 = vdwg.mxu0
    %v700 = vmax.f32 %v697, 0.0
    %v701 = vpack.c.bf16 %v700, %v700
    %v703 = vperm.slane %v667, 0
    %v721 = vunpack.c.l.b16 %v651
    %v722 = vunpack.c.l.b16 %v652
    %v723 = vunpack.c.l.b16 %v653
    %v724 = vunpack.c.l.b16 %v654
    %v725 = vunpack.c.l.b16 %v655
    %v726 = vunpack.c.l.b16 %v656
    %v727 = vunpack.c.l.b16 %v657
    %v728 = vunpack.c.l.b16 %v658
    %v729 = vunpack.c.l.b16 %v659
    %v730 = vunpack.c.l.b16 %v660
    %v731 = vunpack.c.l.b16 %v661
    %v732 = vunpack.c.l.b16 %v662
    %v733 = vunpack.c.l.b16 %v663
    %v734 = vunpack.c.l.b16 %v664
    %v735 = vunpack.c.l.b16 %v665
    %v736 = vunpack.c.l.b16 %v666
    %v737 = vpack.c.b16 %v722, %v721
    %v738 = vpack.c.b16 %v724, %v723
    %v739 = vpack.c.b16 %v726, %v725
    %v740 = vpack.c.b16 %v728, %v727
    %v741 = vpack.c.b16 %v730, %v729
    %v742 = vpack.c.b16 %v732, %v731
    %v743 = vpack.c.b16 %v734, %v733
    %v744 = vpack.c.b16 %v736, %v735
    %753 = vmatpush.bf16.msra.mxu0 %v744
    %754 = vmatpush.bf16.msra.mxu0 %v743
    %755 = vmatpush.bf16.msra.mxu0 %v742
    %756 = vmatpush.bf16.msra.mxu0 %v741
    %757 = vmatpush.bf16.msra.mxu0 %v740
    %758 = vmatpush.bf16.msra.mxu0 %v739
    %759 = vmatpush.bf16.msra.mxu0 %v738
    %760 = vmatpush.bf16.msra.mxu0 %v737
    %761 = vmatmul.bf16.gmra.mxu0 %v701
    %v762 = vpop.f32.mrf.mxu0
    %v763 = vadd.f32 %v703, %v762
    %v764 = vpop.f32.mrf.mxu0
    %765 = vdwg.mxu0
    %v766 = vadd.f32 %v763, %v611
    %767 = vst.msk [vmem:[#allocation2] sm:$0xff] %vm43, %v766
    // Predicated region
    $region46: #{tpu_custom_call.1} parent=1 // pred_check
      _
    $region47: #{tpu_custom_call.1} parent=1 // pred_check_branch
      %769 = sbr.rel (0) target = $region49
    $region48: #{tpu_custom_call.1} parent=1 // pred_region
      %771 = vsyncadd [#allocation3], 0
      %s773 = sshll.u32 [#allocation2], 4
      %s774 = int_to_ptr.vmem [resolvable:$true] %s773
      %s775 = sshll.u32 %s11, 4
      %s776 = int_to_ptr.hbm [resolvable:$true] %s775
      %778 = dma.vmem_to_hbm [thread:$0]  %s774, 128, %s776, [#allocation3]
    $region49: #{tpu_custom_call.1} parent=1 // pred_fallthru
      _
    // Predicated region
    $region50: #{tpu_custom_call.1} parent=1 // pred_check
      _
    $region51: #{tpu_custom_call.1} parent=1 // pred_check_branch
      %780 = sbr.rel (0) target = $region53
    $region52: #{tpu_custom_call.1} parent=1 // pred_region
      %782 = dma.done [#allocation3], 128
    $region53: #{tpu_custom_call.1} parent=1 // pred_fallthru
      _
    %783 = vsyncpa [#allocation3], 1

</llo_original>
